<compile_context>
chip_gen: v6e
topology: v6e:2x2x1
jax: 0.10.0
libtpu: 0.0.40
codegen_flags: <defaults>
</compile_context>

<pallas_src>
import math

import jax
import jax.numpy as jnp
from jax.experimental import pallas as pl
from jax.experimental.pallas import tpu as pltpu


def _leaky_relu(x, slope=0.2):
    return jnp.where(x > 0, x, slope * x)


def discriminator_kernel(x_ref,
                         w1_ref, b1_ref,
                         w2_ref, b2_ref,
                         w3_ref, b3_ref,
                         w4_ref, b4_ref,
                         o_ref):
    # x_ref: (D_pad, TB) bf16 ; weights: bf16 (out, in) ; biases: f32 (out, 1)
    x = x_ref[...]

    h = jnp.dot(w1_ref[...], x, preferred_element_type=jnp.float32)
    h = _leaky_relu(h + b1_ref[...])

    h = jnp.dot(w2_ref[...], h.astype(jnp.bfloat16),
                preferred_element_type=jnp.float32)
    h = _leaky_relu(h + b2_ref[...])

    h = jnp.dot(w3_ref[...], h.astype(jnp.bfloat16),
                preferred_element_type=jnp.float32)
    h = _leaky_relu(h + b3_ref[...])                      # (64, TB) f32

    # Final 64 -> 1 layer: broadcast-multiply + sublane reduce (VPU/XLU),
    # keeping the degenerate matmul off the MXU; result is lane-dense (1, TB).
    logits = jnp.sum(h * w4_ref[...], axis=0, keepdims=True) + b4_ref[...]

    # Sigmoid: exp + approximate reciprocal both issue on the otherwise-idle EUP.
    o_ref[...] = pl.reciprocal(1.0 + jnp.exp(-logits), approx=True).astype(o_ref.dtype)


def _round_up(n, m):
    return m * pl.cdiv(n, m)


def discriminator_forward(x, params):
    """x: (B, D_in) float32. params: PyTorch-layout weights (out,in), biases (out,)."""
    B, D = x.shape
    D_pad = _round_up(D, 128)
    TB = 128 if B <= 128 else 256            # lane-dense batch tile, VMEM-safe on v7x
    B_pad = _round_up(B, TB)
    n_tiles = B_pad // TB

    # Wrapper-side layout plumbing: transpose to (features, batch), zero-pad,
    # cast matmul operands to bf16; biases stay f32 columns.
    xT = jnp.pad(x.T.astype(jnp.bfloat16), ((0, D_pad - D), (0, B_pad - B)))
    w1 = jnp.pad(params["w1"].astype(jnp.bfloat16), ((0, 0), (0, D_pad - D)))
    w2 = params["w2"].astype(jnp.bfloat16)
    w3 = params["w3"].astype(jnp.bfloat16)
    w4 = params["w4"].astype(jnp.float32).reshape(-1, 1)          # (64, 1) column
    b1 = params["b1"].reshape(-1, 1)
    b2 = params["b2"].reshape(-1, 1)
    b3 = params["b3"].reshape(-1, 1)
    b4 = params["b4"].reshape(1, 1)

    const = lambda i: (0, 0)   # weights/biases: fetched once, VMEM-resident across grid
    out_row = pl.pallas_call(
        discriminator_kernel,
        out_shape=jax.ShapeDtypeStruct((1, B_pad), jnp.float32),
        grid=(n_tiles,),
        in_specs=[
            pl.BlockSpec((D_pad, TB), lambda i: (0, i)),          # x tile (pipelined)
            pl.BlockSpec(w1.shape, const),
            pl.BlockSpec(b1.shape, const),
            pl.BlockSpec(w2.shape, const),
            pl.BlockSpec(b2.shape, const),
            pl.BlockSpec(w3.shape, const),
            pl.BlockSpec(b3.shape, const),
            pl.BlockSpec(w4.shape, const),
            pl.BlockSpec(b4.shape, const),
        ],
        out_specs=pl.BlockSpec((1, TB), lambda i: (0, i)),        # lane-dense output
        compiler_params=pltpu.CompilerParams(
            dimension_semantics=("parallel",),
            vmem_limit_bytes=32 * 1024 * 1024),
    )(xT, w1, b1, w2, b2, w3, b3, w4, b4)

    return out_row[:, :B].T                                       # (B, 1)


def init_linear_params(key, in_features, out_features):
    """Deterministic init mimicking torch.nn.Linear default (uniform +-1/sqrt(fan_in)).
    Weight kept in PyTorch layout (out_features, in_features)."""
    kw, kb = jax.random.split(key)
    bound = 1.0 / math.sqrt(in_features)
    w = jax.random.uniform(kw, (out_features, in_features), jnp.float32,
                           minval=-bound, maxval=bound)
    b = jax.random.uniform(kb, (out_features,), jnp.float32,
                           minval=-bound, maxval=bound)
    return w, b


def make_discriminator_params(key, latent_dim, label_size, use_label):
    d_in = latent_dim + label_size if use_label else latent_dim
    dims = [d_in, 256, 128, 64, 1]
    params = {}
    keys = jax.random.split(key, 4)
    for i in range(4):
        w, b = init_linear_params(keys[i], dims[i], dims[i + 1])
        params[f"w{i + 1}"] = w
        params[f"b{i + 1}"] = b
    return params


def one_hot(y, num_classes):
    # Glue (matches the torch one_hot helper); stays in plain JAX.
    return jax.nn.one_hot(y, num_classes, dtype=jnp.float32)


def discriminator_apply(x, y, params, label_size, use_label):
    if use_label:
        x = jnp.concatenate([x, one_hot(y, label_size)], axis=1)
    return discriminator_forward(x, params)


def reference_apply(x, y, params, label_size, use_label):
    # Pure-JAX f32 reference (true module semantics) for correctness check.
    if use_label:
        x = jnp.concatenate([x, one_hot(y, label_size)], axis=1)
    h = x
    for i in range(1, 4):
        h = h @ params[f"w{i}"].T + params[f"b{i}"]
        h = jnp.where(h > 0, h, 0.2 * h)
    logits = h @ params["w4"].T + params["b4"]
    return jax.nn.sigmoid(logits)


if __name__ == "__main__":
    key = jax.random.PRNGKey(0)
    k_param, k_x, k_y = jax.random.split(key, 3)

    batch = 8
    latent_dim = 32
    label_size = 4
    use_label = True

    params = make_discriminator_params(k_param, latent_dim, label_size, use_label)

    x = jax.random.normal(k_x, (batch, latent_dim), dtype=jnp.float32)
    y = jax.random.randint(k_y, (batch,), 0, label_size, dtype=jnp.int32)

    out = discriminator_apply(x, y, params, label_size, use_label)
    out = jax.block_until_ready(out)

    ref = reference_apply(x, y, params, label_size, use_label)
    assert out.shape == (batch, 1), out.shape
    err = float(jnp.max(jnp.abs(out - ref)))
    # bf16 matmul operands + approximate EUP reciprocal -> loose tolerance vs f32 ref.
    assert err < 3e-2, f"max abs err {err} vs f32 reference"

    print("KERNEL_OK")
</pallas_src>

<mosaic_0001>
module attributes {stable_mosaic.version = 11 : i64} {
  func.func @discriminator_kernel(%arg0: i32, %arg1: memref<128x128xbf16, #tpu.memory_space<vmem>>, %arg2: memref<256x128xbf16, #tpu.memory_space<vmem>>, %arg3: memref<256x1xf32, #tpu.memory_space<vmem>>, %arg4: memref<128x256xbf16, #tpu.memory_space<vmem>>, %arg5: memref<128x1xf32, #tpu.memory_space<vmem>>, %arg6: memref<64x128xbf16, #tpu.memory_space<vmem>>, %arg7: memref<64x1xf32, #tpu.memory_space<vmem>>, %arg8: memref<64x1xf32, #tpu.memory_space<vmem>>, %arg9: memref<1x1xf32, #tpu.memory_space<vmem>>, %arg10: memref<1x128xf32, #tpu.memory_space<vmem>>) attributes {dimension_semantics = [#tpu.dimension_semantics<parallel>], iteration_bounds = array<i64: 1>, scalar_prefetch = 0 : i64, scratch_operands = 0 : i64, tpu.core_type = #tpu.core_type<tc>, window_params = [{transform_indices = @transform_0, window_bounds = array<i64: 128, 128>}, {pipeline_mode = #tpu.pipeline_mode<synchronous>, transform_indices = @transform_1, window_bounds = array<i64: 256, 128>}, {pipeline_mode = #tpu.pipeline_mode<synchronous>, transform_indices = @transform_2, window_bounds = array<i64: 256, 1>}, {pipeline_mode = #tpu.pipeline_mode<synchronous>, transform_indices = @transform_3, window_bounds = array<i64: 128, 256>}, {pipeline_mode = #tpu.pipeline_mode<synchronous>, transform_indices = @transform_4, window_bounds = array<i64: 128, 1>}, {pipeline_mode = #tpu.pipeline_mode<synchronous>, transform_indices = @transform_5, window_bounds = array<i64: 64, 128>}, {pipeline_mode = #tpu.pipeline_mode<synchronous>, transform_indices = @transform_6, window_bounds = array<i64: 64, 1>}, {pipeline_mode = #tpu.pipeline_mode<synchronous>, transform_indices = @transform_7, window_bounds = array<i64: 64, 1>}, {pipeline_mode = #tpu.pipeline_mode<synchronous>, transform_indices = @transform_8, window_bounds = array<i64: 1, 1>}, {transform_indices = @transform_9, window_bounds = array<i64: 1, 128>}]} {
    %c0 = arith.constant 0 : index
    %c0_0 = arith.constant 0 : index
    %0 = vector.load %arg1[%c0, %c0_0] : memref<128x128xbf16, #tpu.memory_space<vmem>>, vector<128x128xbf16>
    %c0_1 = arith.constant 0 : index
    %c0_2 = arith.constant 0 : index
    %1 = vector.load %arg2[%c0_1, %c0_2] : memref<256x128xbf16, #tpu.memory_space<vmem>>, vector<256x128xbf16>
    %cst = arith.constant dense<0.000000e+00> : vector<256x128xf32>
    %2 = tpu.matmul %1, %0, %cst {dimension_numbers = #tpu.dot_dimension_numbers<[1], [0], [0], [1], [0, 0, 1, 1], [], []>} : vector<256x128xbf16>, vector<128x128xbf16>, vector<256x128xf32> -> vector<256x128xf32>
    %c0_3 = arith.constant 0 : index
    %c0_4 = arith.constant 0 : index
    %3 = vector.load %arg3[%c0_3, %c0_4] : memref<256x1xf32, #tpu.memory_space<vmem>>, vector<256x1xf32>
    %4 = vector.broadcast %3 : vector<256x1xf32> to vector<256x128xf32>
    %5 = arith.addf %2, %4 : vector<256x128xf32>
    %cst_5 = arith.constant 0.000000e+00 : f32
    %6 = vector.broadcast %cst_5 : f32 to vector<256x128xf32>
    %7 = arith.cmpf ogt, %5, %6 : vector<256x128xf32>
    %cst_6 = arith.constant 2.000000e-01 : f32
    %8 = vector.broadcast %cst_6 : f32 to vector<256x128xf32>
    %9 = arith.mulf %8, %5 : vector<256x128xf32>
    %10 = arith.select %7, %5, %9 : vector<256x128xi1>, vector<256x128xf32>
    %c0_7 = arith.constant 0 : index
    %c0_8 = arith.constant 0 : index
    %11 = vector.load %arg4[%c0_7, %c0_8] : memref<128x256xbf16, #tpu.memory_space<vmem>>, vector<128x256xbf16>
    %12 = arith.truncf %10 : vector<256x128xf32> to vector<256x128xbf16>
    %cst_9 = arith.constant dense<0.000000e+00> : vector<128x128xf32>
    %13 = tpu.matmul %11, %12, %cst_9 {dimension_numbers = #tpu.dot_dimension_numbers<[1], [0], [0], [1], [0, 0, 1, 1], [], []>} : vector<128x256xbf16>, vector<256x128xbf16>, vector<128x128xf32> -> vector<128x128xf32>
    %c0_10 = arith.constant 0 : index
    %c0_11 = arith.constant 0 : index
    %14 = vector.load %arg5[%c0_10, %c0_11] : memref<128x1xf32, #tpu.memory_space<vmem>>, vector<128x1xf32>
    %15 = vector.broadcast %14 : vector<128x1xf32> to vector<128x128xf32>
    %16 = arith.addf %13, %15 : vector<128x128xf32>
    %cst_12 = arith.constant 0.000000e+00 : f32
    %17 = vector.broadcast %cst_12 : f32 to vector<128x128xf32>
    %18 = arith.cmpf ogt, %16, %17 : vector<128x128xf32>
    %cst_13 = arith.constant 2.000000e-01 : f32
    %19 = vector.broadcast %cst_13 : f32 to vector<128x128xf32>
    %20 = arith.mulf %19, %16 : vector<128x128xf32>
    %21 = arith.select %18, %16, %20 : vector<128x128xi1>, vector<128x128xf32>
    %c0_14 = arith.constant 0 : index
    %c0_15 = arith.constant 0 : index
    %22 = vector.load %arg6[%c0_14, %c0_15] : memref<64x128xbf16, #tpu.memory_space<vmem>>, vector<64x128xbf16>
    %23 = arith.truncf %21 : vector<128x128xf32> to vector<128x128xbf16>
    %cst_16 = arith.constant dense<0.000000e+00> : vector<64x128xf32>
    %24 = tpu.matmul %22, %23, %cst_16 {dimension_numbers = #tpu.dot_dimension_numbers<[1], [0], [0], [1], [0, 0, 1, 1], [], []>} : vector<64x128xbf16>, vector<128x128xbf16>, vector<64x128xf32> -> vector<64x128xf32>
    %c0_17 = arith.constant 0 : index
    %c0_18 = arith.constant 0 : index
    %25 = vector.load %arg7[%c0_17, %c0_18] : memref<64x1xf32, #tpu.memory_space<vmem>>, vector<64x1xf32>
    %26 = vector.broadcast %25 : vector<64x1xf32> to vector<64x128xf32>
    %27 = arith.addf %24, %26 : vector<64x128xf32>
    %cst_19 = arith.constant 0.000000e+00 : f32
    %28 = vector.broadcast %cst_19 : f32 to vector<64x128xf32>
    %29 = arith.cmpf ogt, %27, %28 : vector<64x128xf32>
    %cst_20 = arith.constant 2.000000e-01 : f32
    %30 = vector.broadcast %cst_20 : f32 to vector<64x128xf32>
    %31 = arith.mulf %30, %27 : vector<64x128xf32>
    %32 = arith.select %29, %27, %31 : vector<64x128xi1>, vector<64x128xf32>
    %c0_21 = arith.constant 0 : index
    %c0_22 = arith.constant 0 : index
    %33 = vector.load %arg8[%c0_21, %c0_22] : memref<64x1xf32, #tpu.memory_space<vmem>>, vector<64x1xf32>
    %34 = vector.broadcast %33 : vector<64x1xf32> to vector<64x128xf32>
    %35 = arith.mulf %32, %34 : vector<64x128xf32>
    %cst_23 = arith.constant dense<0.000000e+00> : vector<128xf32>
    %36 = vector.multi_reduction <add>, %35, %cst_23 [0] : vector<64x128xf32> to vector<128xf32>
    %37 = vector.shape_cast %36 : vector<128xf32> to vector<1x128xf32>
    %c0_24 = arith.constant 0 : index
    %c0_25 = arith.constant 0 : index
    %38 = vector.load %arg9[%c0_24, %c0_25] : memref<1x1xf32, #tpu.memory_space<vmem>>, vector<1x1xf32>
    %39 = vector.broadcast %38 : vector<1x1xf32> to vector<1x128xf32>
    %40 = arith.addf %37, %39 : vector<1x128xf32>
    %cst_26 = arith.constant 0.000000e+00 : f32
    %41 = vector.broadcast %cst_26 : f32 to vector<1x128xf32>
    %42 = arith.subf %41, %40 : vector<1x128xf32>
    %43 = math.exp %42 : vector<1x128xf32>
    %cst_27 = arith.constant 1.000000e+00 : f32
    %44 = vector.broadcast %cst_27 : f32 to vector<1x128xf32>
    %45 = arith.addf %44, %43 : vector<1x128xf32>
    %46 = tpu.reciprocal %45 {approx = true} : vector<1x128xf32> -> vector<1x128xf32>
    %c0_28 = arith.constant 0 : index
    %c0_29 = arith.constant 0 : index
    %47 = vector.load %arg10[%c0_28, %c0_29] : memref<1x128xf32, #tpu.memory_space<vmem>>, vector<1x128xf32>
    tpu.vector_store %arg10[%c0_28, %c0_29], %46 {strides = array<i32>} : memref<1x128xf32, #tpu.memory_space<vmem>>, vector<1x128xf32>,
    return
  }
  func.func @transform_0(%arg0: i32) -> (i32, i32) {
    %c0_i32 = arith.constant 0 : i32
    %c0_i32_0 = arith.constant 0 : i32
    return %c0_i32, %arg0 : i32, i32
  }
  func.func @transform_1(%arg0: i32) -> (i32, i32) {
    %c0_i32 = arith.constant 0 : i32
    %c0_i32_0 = arith.constant 0 : i32
    %c0_i32_1 = arith.constant 0 : i32
    return %c0_i32, %c0_i32_0 : i32, i32
  }
  func.func @transform_2(%arg0: i32) -> (i32, i32) {
    %c0_i32 = arith.constant 0 : i32
    %c0_i32_0 = arith.constant 0 : i32
    %c0_i32_1 = arith.constant 0 : i32
    return %c0_i32, %c0_i32_0 : i32, i32
  }
  func.func @transform_3(%arg0: i32) -> (i32, i32) {
    %c0_i32 = arith.constant 0 : i32
    %c0_i32_0 = arith.constant 0 : i32
    %c0_i32_1 = arith.constant 0 : i32
    return %c0_i32, %c0_i32_0 : i32, i32
  }
  func.func @transform_4(%arg0: i32) -> (i32, i32) {
    %c0_i32 = arith.constant 0 : i32
    %c0_i32_0 = arith.constant 0 : i32
    %c0_i32_1 = arith.constant 0 : i32
    return %c0_i32, %c0_i32_0 : i32, i32
  }
  func.func @transform_5(%arg0: i32) -> (i32, i32) {
    %c0_i32 = arith.constant 0 : i32
    %c0_i32_0 = arith.constant 0 : i32
    %c0_i32_1 = arith.constant 0 : i32
    return %c0_i32, %c0_i32_0 : i32, i32
  }
  func.func @transform_6(%arg0: i32) -> (i32, i32) {
    %c0_i32 = arith.constant 0 : i32
    %c0_i32_0 = arith.constant 0 : i32
    %c0_i32_1 = arith.constant 0 : i32
    return %c0_i32, %c0_i32_0 : i32, i32
  }
  func.func @transform_7(%arg0: i32) -> (i32, i32) {
    %c0_i32 = arith.constant 0 : i32
    %c0_i32_0 = arith.constant 0 : i32
    %c0_i32_1 = arith.constant 0 : i32
    return %c0_i32, %c0_i32_0 : i32, i32
  }
  func.func @transform_8(%arg0: i32) -> (i32, i32) {
    %c0_i32 = arith.constant 0 : i32
    %c0_i32_0 = arith.constant 0 : i32
    %c0_i32_1 = arith.constant 0 : i32
    return %c0_i32, %c0_i32_0 : i32, i32
  }
  func.func @transform_9(%arg0: i32) -> (i32, i32) {
    %c0_i32 = arith.constant 0 : i32
    %c0_i32_0 = arith.constant 0 : i32
    return %c0_i32, %arg0 : i32, i32
  }
}

</mosaic_0001>

<llo_original>
// kernel: tpu_custom_call.1
$region0: #{tpu_custom_call.1}
  #allocation0 [shape = 'u32[]', space=smem, size = 0x4, offset = 0x4, fixed_abs, tag = 'smem constant byte address 0x4 - core index']
  #allocation1 [shape = 'u32[144,128]{1,0:T(1,128)}', space=vmem, size = 0x12000, scoped, tag = 'internal scratch']
  #allocation2 [shape = 'f32[1,1]{1,0:T(1,128)S(1)}', space=vmem, size = 0x200, scoped, tag = 'scoped memory for tpu_custom_call.1']
  %s0 = inlined_call_operand.vmem [shape: bf16[128,128], index: 0, kind: input, shape index: {}]
  %s1 = inlined_call_operand.vmem [shape: bf16[256,128], index: 1, kind: input, shape index: {}]
  %s2 = inlined_call_operand.vmem [shape: f32[256,1], index: 2, kind: input, shape index: {}]
  %s3 = inlined_call_operand.vmem [shape: bf16[128,256], index: 3, kind: input, shape index: {}]
  %s4 = inlined_call_operand.vmem [shape: f32[128,1], index: 4, kind: input, shape index: {}]
  %s5 = inlined_call_operand.vmem [shape: bf16[64,128], index: 5, kind: input, shape index: {}]
  %s6 = inlined_call_operand.vmem [shape: f32[64,1], index: 6, kind: input, shape index: {}]
  %s7 = inlined_call_operand.vmem [shape: f32[64,1], index: 7, kind: input, shape index: {}]
  %s8 = inlined_call_operand.<no memory space> [shape: f32[1,1], index: 8, kind: input, shape index: {}]
  %s9 = inlined_call_operand.hbm [shape: f32[1,128], index: 9, kind: output, shape index: {}]
  %s10 = sld [smem:[#allocation0]]
  $region46: #{tpu_custom_call.1} parent=0
    _
  %s12 = ssub.s32 1, %s10
  %s13 = scalar_select 0, %s12, %s10
  %v14 = vstv %s8
  %15 = vst [vmem:[#allocation2] sm:$0x1] %v14
  $region1: #{tpu_custom_call.1} parent=0
    #allocation3 [shape = 'u8[512]{0}', space=vmem, size = 0x400, scoped, tag = 'output window, operand 0, single buffered']
    #allocation4 [shape = 's32[1]{0}', space=sflag, size = 0x4, scoped, tag = 'scoped memory for tpu_custom_call.1']
    %16 = vsyncpa [#allocation4], 0
    // Predicated region
    $region2: #{tpu_custom_call.1} parent=1 // pred_check
      _
    $region3: #{tpu_custom_call.1} parent=1 // pred_check_branch
      %18 = sbr.rel (0) target = $region5
    $region4: #{tpu_custom_call.1} parent=1 // pred_region
      _
    $region5: #{tpu_custom_call.1} parent=1 // pred_fallthru
      _
    // Predicated region
    $region6: #{tpu_custom_call.1} parent=1 // pred_check
      _
    $region7: #{tpu_custom_call.1} parent=1 // pred_check_branch
      %20 = sbr.rel (0) target = $region9
    $region8: #{tpu_custom_call.1} parent=1 // pred_region
      _
    $region9: #{tpu_custom_call.1} parent=1 // pred_fallthru
      _
    // Predicated region
    $region10: #{tpu_custom_call.1} parent=1 // pred_check
      _
    $region11: #{tpu_custom_call.1} parent=1 // pred_check_branch
      %22 = sbr.rel (0) target = $region13
    $region12: #{tpu_custom_call.1} parent=1 // pred_region
      _
    $region13: #{tpu_custom_call.1} parent=1 // pred_fallthru
      _
    // Predicated region
    $region14: #{tpu_custom_call.1} parent=1 // pred_check
      _
    $region15: #{tpu_custom_call.1} parent=1 // pred_check_branch
      %24 = sbr.rel (0) target = $region17
    $region16: #{tpu_custom_call.1} parent=1 // pred_region
      _
    $region17: #{tpu_custom_call.1} parent=1 // pred_fallthru
      _
    // Predicated region
    $region18: #{tpu_custom_call.1} parent=1 // pred_check
      _
    $region19: #{tpu_custom_call.1} parent=1 // pred_check_branch
      %26 = sbr.rel (0) target = $region21
    $region20: #{tpu_custom_call.1} parent=1 // pred_region
      _
    $region21: #{tpu_custom_call.1} parent=1 // pred_fallthru
      _
    // Predicated region
    $region22: #{tpu_custom_call.1} parent=1 // pred_check
      _
    $region23: #{tpu_custom_call.1} parent=1 // pred_check_branch
      %28 = sbr.rel (0) target = $region25
    $region24: #{tpu_custom_call.1} parent=1 // pred_region
      _
    $region25: #{tpu_custom_call.1} parent=1 // pred_fallthru
      _
    // Predicated region
    $region26: #{tpu_custom_call.1} parent=1 // pred_check
      _
    $region27: #{tpu_custom_call.1} parent=1 // pred_check_branch
      %30 = sbr.rel (0) target = $region29
    $region28: #{tpu_custom_call.1} parent=1 // pred_region
      _
    $region29: #{tpu_custom_call.1} parent=1 // pred_fallthru
      _
    // Predicated region
    $region30: #{tpu_custom_call.1} parent=1 // pred_check
      _
    $region31: #{tpu_custom_call.1} parent=1 // pred_check_branch
      %32 = sbr.rel (0) target = $region33
    $region32: #{tpu_custom_call.1} parent=1 // pred_region
      _
    $region33: #{tpu_custom_call.1} parent=1 // pred_fallthru
      _
    // Predicated region
    $region34: #{tpu_custom_call.1} parent=1 // pred_check
      _
    $region35: #{tpu_custom_call.1} parent=1 // pred_check_branch
      %34 = sbr.rel (0) target = $region37
    $region36: #{tpu_custom_call.1} parent=1 // pred_region
      _
    $region37: #{tpu_custom_call.1} parent=1 // pred_fallthru
      _
    %v36 = vld [vmem:[%s0] sm:$0xf]
    %v37 = vld [vmem:[%s0 + $0x4] sm:$0xf]
    %v38 = vld [vmem:[%s0 + $0x8] sm:$0xf]
    %v39 = vld [vmem:[%s0 + $0xc] sm:$0xf]
    %v40 = vld [vmem:[%s0 + $0x10] sm:$0xf]
    %v41 = vld [vmem:[%s0 + $0x14] sm:$0xf]
    %v42 = vld [vmem:[%s0 + $0x18] sm:$0xf]
    %v43 = vld [vmem:[%s0 + $0x1c] sm:$0xf]
    %v44 = vld [vmem:[%s0 + $0x20] sm:$0xf]
    %v45 = vld [vmem:[%s0 + $0x24] sm:$0xf]
    %v46 = vld [vmem:[%s0 + $0x28] sm:$0xf]
    %v47 = vld [vmem:[%s0 + $0x2c] sm:$0xf]
    %v48 = vld [vmem:[%s0 + $0x30] sm:$0xf]
    %v49 = vld [vmem:[%s0 + $0x34] sm:$0xf]
    %v50 = vld [vmem:[%s0 + $0x38] sm:$0xf]
    %v51 = vld [vmem:[%s0 + $0x3c] sm:$0xf]
    %v52 = vld [vmem:[%s1] sm:$0xf]
    %v53 = vld [vmem:[%s1 + $0x4] sm:$0xf]
    %v54 = vld [vmem:[%s1 + $0x8] sm:$0xf]
    %v55 = vld [vmem:[%s1 + $0xc] sm:$0xf]
    %v56 = vld [vmem:[%s1 + $0x10] sm:$0xf]
    %v57 = vld [vmem:[%s1 + $0x14] sm:$0xf]
    %v58 = vld [vmem:[%s1 + $0x18] sm:$0xf]
    %v59 = vld [vmem:[%s1 + $0x1c] sm:$0xf]
    %v60 = vld [vmem:[%s1 + $0x20] sm:$0xf]
    %v61 = vld [vmem:[%s1 + $0x24] sm:$0xf]
    %v62 = vld [vmem:[%s1 + $0x28] sm:$0xf]
    %v63 = vld [vmem:[%s1 + $0x2c] sm:$0xf]
    %v64 = vld [vmem:[%s1 + $0x30] sm:$0xf]
    %v65 = vld [vmem:[%s1 + $0x34] sm:$0xf]
    %v66 = vld [vmem:[%s1 + $0x38] sm:$0xf]
    %v67 = vld [vmem:[%s1 + $0x3c] sm:$0xf]
    %v68 = vld [vmem:[%s1 + $0x40] sm:$0xf]
    %v69 = vld [vmem:[%s1 + $0x44] sm:$0xf]
    %v70 = vld [vmem:[%s1 + $0x48] sm:$0xf]
    %v71 = vld [vmem:[%s1 + $0x4c] sm:$0xf]
    %v72 = vld [vmem:[%s1 + $0x50] sm:$0xf]
    %v73 = vld [vmem:[%s1 + $0x54] sm:$0xf]
    %v74 = vld [vmem:[%s1 + $0x58] sm:$0xf]
    %v75 = vld [vmem:[%s1 + $0x5c] sm:$0xf]
    %v76 = vld [vmem:[%s1 + $0x60] sm:$0xf]
    %v77 = vld [vmem:[%s1 + $0x64] sm:$0xf]
    %v78 = vld [vmem:[%s1 + $0x68] sm:$0xf]
    %v79 = vld [vmem:[%s1 + $0x6c] sm:$0xf]
    %v80 = vld [vmem:[%s1 + $0x70] sm:$0xf]
    %v81 = vld [vmem:[%s1 + $0x74] sm:$0xf]
    %v82 = vld [vmem:[%s1 + $0x78] sm:$0xf]
    %v83 = vld [vmem:[%s1 + $0x7c] sm:$0xf]
    %v84 = vld [vmem:[%s2] sm:$0xff]
    %v85 = vld [vmem:[%s2 + $0x8] sm:$0xff]
    %v86 = vld [vmem:[%s2 + $0x10] sm:$0xff]
    %v87 = vld [vmem:[%s2 + $0x18] sm:$0xff]
    %v88 = vld [vmem:[%s2 + $0x20] sm:$0xff]
    %v89 = vld [vmem:[%s2 + $0x28] sm:$0xff]
    %v90 = vld [vmem:[%s2 + $0x30] sm:$0xff]
    %v91 = vld [vmem:[%s2 + $0x38] sm:$0xff]
    %v92 = vld [vmem:[%s2 + $0x40] sm:$0xff]
    %v93 = vld [vmem:[%s2 + $0x48] sm:$0xff]
    %v94 = vld [vmem:[%s2 + $0x50] sm:$0xff]
    %v95 = vld [vmem:[%s2 + $0x58] sm:$0xff]
    %v96 = vld [vmem:[%s2 + $0x60] sm:$0xff]
    %v97 = vld [vmem:[%s2 + $0x68] sm:$0xff]
    %v98 = vld [vmem:[%s2 + $0x70] sm:$0xff]
    %v99 = vld [vmem:[%s2 + $0x78] sm:$0xff]
    %v100 = vld [vmem:[%s2 + $0x80] sm:$0xff]
    %v101 = vld [vmem:[%s2 + $0x88] sm:$0xff]
    %v102 = vld [vmem:[%s2 + $0x90] sm:$0xff]
    %v103 = vld [vmem:[%s2 + $0x98] sm:$0xff]
    %v104 = vld [vmem:[%s2 + $0xa0] sm:$0xff]
    %v105 = vld [vmem:[%s2 + $0xa8] sm:$0xff]
    %v106 = vld [vmem:[%s2 + $0xb0] sm:$0xff]
    %v107 = vld [vmem:[%s2 + $0xb8] sm:$0xff]
    %v108 = vld [vmem:[%s2 + $0xc0] sm:$0xff]
    %v109 = vld [vmem:[%s2 + $0xc8] sm:$0xff]
    %v110 = vld [vmem:[%s2 + $0xd0] sm:$0xff]
    %v111 = vld [vmem:[%s2 + $0xd8] sm:$0xff]
    %v112 = vld [vmem:[%s2 + $0xe0] sm:$0xff]
    %v113 = vld [vmem:[%s2 + $0xe8] sm:$0xff]
    %v114 = vld [vmem:[%s2 + $0xf0] sm:$0xff]
    %v115 = vld [vmem:[%s2 + $0xf8] sm:$0xff]
    %117 = vset.pattern.permute.xlu0 0
    %118 = vperm.xlu0 %117, %v84
    %v119 = vpop.permute.xlu0 %118
    %122 = vset.pattern.permute.xlu0 0
    %123 = vperm.xlu0 %122, %v85
    %v124 = vpop.permute.xlu0 %123
    %127 = vset.pattern.permute.xlu0 0
    %128 = vperm.xlu0 %127, %v86
    %v129 = vpop.permute.xlu0 %128
    %132 = vset.pattern.permute.xlu0 0
    %133 = vperm.xlu0 %132, %v87
    %v134 = vpop.permute.xlu0 %133
    %137 = vset.pattern.permute.xlu0 0
    %138 = vperm.xlu0 %137, %v88
    %v139 = vpop.permute.xlu0 %138
    %142 = vset.pattern.permute.xlu0 0
    %143 = vperm.xlu0 %142, %v89
    %v144 = vpop.permute.xlu0 %143
    %147 = vset.pattern.permute.xlu0 0
    %148 = vperm.xlu0 %147, %v90
    %v149 = vpop.permute.xlu0 %148
    %152 = vset.pattern.permute.xlu0 0
    %153 = vperm.xlu0 %152, %v91
    %v154 = vpop.permute.xlu0 %153
    %157 = vset.pattern.permute.xlu0 0
    %158 = vperm.xlu0 %157, %v92
    %v159 = vpop.permute.xlu0 %158
    %162 = vset.pattern.permute.xlu0 0
    %163 = vperm.xlu0 %162, %v93
    %v164 = vpop.permute.xlu0 %163
    %167 = vset.pattern.permute.xlu0 0
    %168 = vperm.xlu0 %167, %v94
    %v169 = vpop.permute.xlu0 %168
    %172 = vset.pattern.permute.xlu0 0
    %173 = vperm.xlu0 %172, %v95
    %v174 = vpop.permute.xlu0 %173
    %177 = vset.pattern.permute.xlu0 0
    %178 = vperm.xlu0 %177, %v96
    %v179 = vpop.permute.xlu0 %178
    %182 = vset.pattern.permute.xlu0 0
    %183 = vperm.xlu0 %182, %v97
    %v184 = vpop.permute.xlu0 %183
    %187 = vset.pattern.permute.xlu0 0
    %188 = vperm.xlu0 %187, %v98
    %v189 = vpop.permute.xlu0 %188
    %192 = vset.pattern.permute.xlu0 0
    %193 = vperm.xlu0 %192, %v99
    %v194 = vpop.permute.xlu0 %193
    %197 = vset.pattern.permute.xlu0 0
    %198 = vperm.xlu0 %197, %v100
    %v199 = vpop.permute.xlu0 %198
    %202 = vset.pattern.permute.xlu0 0
    %203 = vperm.xlu0 %202, %v101
    %v204 = vpop.permute.xlu0 %203
    %207 = vset.pattern.permute.xlu0 0
    %208 = vperm.xlu0 %207, %v102
    %v209 = vpop.permute.xlu0 %208
    %212 = vset.pattern.permute.xlu0 0
    %213 = vperm.xlu0 %212, %v103
    %v214 = vpop.permute.xlu0 %213
    %217 = vset.pattern.permute.xlu0 0
    %218 = vperm.xlu0 %217, %v104
    %v219 = vpop.permute.xlu0 %218
    %222 = vset.pattern.permute.xlu0 0
    %223 = vperm.xlu0 %222, %v105
    %v224 = vpop.permute.xlu0 %223
    %227 = vset.pattern.permute.xlu0 0
    %228 = vperm.xlu0 %227, %v106
    %v229 = vpop.permute.xlu0 %228
    %232 = vset.pattern.permute.xlu0 0
    %233 = vperm.xlu0 %232, %v107
    %v234 = vpop.permute.xlu0 %233
    %237 = vset.pattern.permute.xlu0 0
    %238 = vperm.xlu0 %237, %v108
    %v239 = vpop.permute.xlu0 %238
    %242 = vset.pattern.permute.xlu0 0
    %243 = vperm.xlu0 %242, %v109
    %v244 = vpop.permute.xlu0 %243
    %247 = vset.pattern.permute.xlu0 0
    %248 = vperm.xlu0 %247, %v110
    %v249 = vpop.permute.xlu0 %248
    %252 = vset.pattern.permute.xlu0 0
    %253 = vperm.xlu0 %252, %v111
    %v254 = vpop.permute.xlu0 %253
    %257 = vset.pattern.permute.xlu0 0
    %258 = vperm.xlu0 %257, %v112
    %v259 = vpop.permute.xlu0 %258
    %262 = vset.pattern.permute.xlu0 0
    %263 = vperm.xlu0 %262, %v113
    %v264 = vpop.permute.xlu0 %263
    %267 = vset.pattern.permute.xlu0 0
    %268 = vperm.xlu0 %267, %v114
    %v269 = vpop.permute.xlu0 %268
    %272 = vset.pattern.permute.xlu0 0
    %273 = vperm.xlu0 %272, %v115
    %v274 = vpop.permute.xlu0 %273
    %v308 = vunpack.c.l.b16 %v52
    %v309 = vunpack.c.l.b16 %v53
    %v310 = vunpack.c.l.b16 %v54
    %v311 = vunpack.c.l.b16 %v55
    %v312 = vunpack.c.l.b16 %v56
    %v313 = vunpack.c.l.b16 %v57
    %v314 = vunpack.c.l.b16 %v58
    %v315 = vunpack.c.l.b16 %v59
    %v316 = vunpack.c.l.b16 %v60
    %v317 = vunpack.c.l.b16 %v61
    %v318 = vunpack.c.l.b16 %v62
    %v319 = vunpack.c.l.b16 %v63
    %v320 = vunpack.c.l.b16 %v64
    %v321 = vunpack.c.l.b16 %v65
    %v322 = vunpack.c.l.b16 %v66
    %v323 = vunpack.c.l.b16 %v67
    %v324 = vunpack.c.l.b16 %v68
    %v325 = vunpack.c.l.b16 %v69
    %v326 = vunpack.c.l.b16 %v70
    %v327 = vunpack.c.l.b16 %v71
    %v328 = vunpack.c.l.b16 %v72
    %v329 = vunpack.c.l.b16 %v73
    %v330 = vunpack.c.l.b16 %v74
    %v331 = vunpack.c.l.b16 %v75
    %v332 = vunpack.c.l.b16 %v76
    %v333 = vunpack.c.l.b16 %v77
    %v334 = vunpack.c.l.b16 %v78
    %v335 = vunpack.c.l.b16 %v79
    %v336 = vunpack.c.l.b16 %v80
    %v337 = vunpack.c.l.b16 %v81
    %v338 = vunpack.c.l.b16 %v82
    %v339 = vunpack.c.l.b16 %v83
    %v340 = vpack.c.b16 %v309, %v308
    %v341 = vpack.c.b16 %v311, %v310
    %v342 = vpack.c.b16 %v313, %v312
    %v343 = vpack.c.b16 %v315, %v314
    %v344 = vpack.c.b16 %v317, %v316
    %v345 = vpack.c.b16 %v319, %v318
    %v346 = vpack.c.b16 %v321, %v320
    %v347 = vpack.c.b16 %v323, %v322
    %v348 = vpack.c.b16 %v325, %v324
    %v349 = vpack.c.b16 %v327, %v326
    %v350 = vpack.c.b16 %v329, %v328
    %v351 = vpack.c.b16 %v331, %v330
    %v352 = vpack.c.b16 %v333, %v332
    %v353 = vpack.c.b16 %v335, %v334
    %v354 = vpack.c.b16 %v337, %v336
    %v355 = vpack.c.b16 %v339, %v338
    %v388 = vunpack.c.l.b16 %v36
    %v389 = vunpack.c.l.b16 %v37
    %v390 = vunpack.c.l.b16 %v38
    %v391 = vunpack.c.l.b16 %v39
    %v392 = vunpack.c.l.b16 %v40
    %v393 = vunpack.c.l.b16 %v41
    %v394 = vunpack.c.l.b16 %v42
    %v395 = vunpack.c.l.b16 %v43
    %v396 = vunpack.c.l.b16 %v44
    %v397 = vunpack.c.l.b16 %v45
    %v398 = vunpack.c.l.b16 %v46
    %v399 = vunpack.c.l.b16 %v47
    %v400 = vunpack.c.l.b16 %v48
    %v401 = vunpack.c.l.b16 %v49
    %v402 = vunpack.c.l.b16 %v50
    %v403 = vunpack.c.l.b16 %v51
    %v404 = vpack.c.b16 %v389, %v388
    %v405 = vpack.c.b16 %v391, %v390
    %v406 = vpack.c.b16 %v393, %v392
    %v407 = vpack.c.b16 %v395, %v394
    %v408 = vpack.c.b16 %v397, %v396
    %v409 = vpack.c.b16 %v399, %v398
    %v410 = vpack.c.b16 %v401, %v400
    %v411 = vpack.c.b16 %v403, %v402
    %420 = vmatprep.subr.bf16.mxu0 0
    %421 = vmatpush1.bf16.msra.mxu0 %v411
    %422 = vmatprep.subr.bf16.mxu0 0
    %423 = vmatpush1.bf16.msra.mxu0 %v410
    %424 = vmatprep.subr.bf16.mxu0 0
    %425 = vmatpush1.bf16.msra.mxu0 %v409
    %426 = vmatprep.subr.bf16.mxu0 0
    %427 = vmatpush1.bf16.msra.mxu0 %v408
    %428 = vmatprep.subr.bf16.mxu0 0
    %429 = vmatpush1.bf16.msra.mxu0 %v407
    %430 = vmatprep.subr.bf16.mxu0 0
    %431 = vmatpush1.bf16.msra.mxu0 %v406
    %432 = vmatprep.subr.bf16.mxu0 0
    %433 = vmatpush1.bf16.msra.mxu0 %v405
    %434 = vmatprep.subr.bf16.mxu0 0
    %435 = vmatpush1.bf16.msra.mxu0 %v404
    %436 = vmatprep.subr.bf16.mxu0 0
    %437 = vmatpush2.bf16.msra.mxu0 0
    %438 = vmatprep.subr.bf16.mxu0 0
    %439 = vmatpush2.bf16.msra.mxu0 0
    %440 = vmatprep.subr.bf16.mxu0 0
    %441 = vmatpush2.bf16.msra.mxu0 0
    %442 = vmatprep.subr.bf16.mxu0 0
    %443 = vmatpush2.bf16.msra.mxu0 0
    %444 = vmatprep.subr.bf16.mxu0 0
    %445 = vmatpush2.bf16.msra.mxu0 0
    %446 = vmatprep.subr.bf16.mxu0 0
    %447 = vmatpush2.bf16.msra.mxu0 0
    %448 = vmatprep.subr.bf16.mxu0 0
    %449 = vmatpush2.bf16.msra.mxu0 0
    %450 = vmatprep.subr.bf16.mxu0 0
    %451 = vmatpush2.bf16.msra.mxu0 0
    %452 = vmatprep.mubr.bf16.mxu0 0
    %453 = vmatmul.mubr.bf16.gmra.mxu0 %v340
    %v454 = vpop.f32.mrf.mxu0
    %v455 = vadd.f32 %v119, %v454
    %v456 = vpop.f32.mrf.mxu0
    %v457 = vpop.f32.mrf.mxu0
    %v458 = vadd.f32 %v124, %v457
    %v459 = vpop.f32.mrf.mxu0
    %460 = vmatprep.mubr.bf16.mxu0 0
    %461 = vmatmul.mubr.bf16.gmra.mxu0 %v341
    %v462 = vpop.f32.mrf.mxu0
    %v463 = vadd.f32 %v129, %v462
    %v464 = vpop.f32.mrf.mxu0
    %v465 = vpop.f32.mrf.mxu0
    %v466 = vadd.f32 %v134, %v465
    %v467 = vpop.f32.mrf.mxu0
    %468 = vmatprep.mubr.bf16.mxu0 0
    %469 = vmatmul.mubr.bf16.gmra.mxu0 %v342
    %v470 = vpop.f32.mrf.mxu0
    %v471 = vadd.f32 %v139, %v470
    %v472 = vpop.f32.mrf.mxu0
    %v473 = vpop.f32.mrf.mxu0
    %v474 = vadd.f32 %v144, %v473
    %v475 = vpop.f32.mrf.mxu0
    %476 = vmatprep.mubr.bf16.mxu0 0
    %477 = vmatmul.mubr.bf16.gmra.mxu0 %v343
    %v478 = vpop.f32.mrf.mxu0
    %v479 = vadd.f32 %v149, %v478
    %v480 = vpop.f32.mrf.mxu0
    %v481 = vpop.f32.mrf.mxu0
    %v482 = vadd.f32 %v154, %v481
    %v483 = vpop.f32.mrf.mxu0
    %484 = vmatprep.mubr.bf16.mxu0 0
    %485 = vmatmul.mubr.bf16.gmra.mxu0 %v344
    %v486 = vpop.f32.mrf.mxu0
    %v487 = vadd.f32 %v159, %v486
    %v488 = vpop.f32.mrf.mxu0
    %v489 = vpop.f32.mrf.mxu0
    %v490 = vadd.f32 %v164, %v489
    %v491 = vpop.f32.mrf.mxu0
    %492 = vmatprep.mubr.bf16.mxu0 0
    %493 = vmatmul.mubr.bf16.gmra.mxu0 %v345
    %v494 = vpop.f32.mrf.mxu0
    %v495 = vadd.f32 %v169, %v494
    %v496 = vpop.f32.mrf.mxu0
    %v497 = vpop.f32.mrf.mxu0
    %v498 = vadd.f32 %v174, %v497
    %v499 = vpop.f32.mrf.mxu0
    %500 = vmatprep.mubr.bf16.mxu0 0
    %501 = vmatmul.mubr.bf16.gmra.mxu0 %v346
    %v502 = vpop.f32.mrf.mxu0
    %v503 = vadd.f32 %v179, %v502
    %v504 = vpop.f32.mrf.mxu0
    %v505 = vpop.f32.mrf.mxu0
    %v506 = vadd.f32 %v184, %v505
    %v507 = vpop.f32.mrf.mxu0
    %508 = vmatprep.mubr.bf16.mxu0 0
    %509 = vmatmul.mubr.bf16.gmra.mxu0 %v347
    %v510 = vpop.f32.mrf.mxu0
    %v511 = vadd.f32 %v189, %v510
    %v512 = vpop.f32.mrf.mxu0
    %v513 = vpop.f32.mrf.mxu0
    %v514 = vadd.f32 %v194, %v513
    %v515 = vpop.f32.mrf.mxu0
    %516 = vmatprep.mubr.bf16.mxu0 0
    %517 = vmatmul.mubr.bf16.gmra.mxu0 %v348
    %v518 = vpop.f32.mrf.mxu0
    %v519 = vadd.f32 %v199, %v518
    %v520 = vpop.f32.mrf.mxu0
    %v521 = vpop.f32.mrf.mxu0
    %v522 = vadd.f32 %v204, %v521
    %v523 = vpop.f32.mrf.mxu0
    %524 = vmatprep.mubr.bf16.mxu0 0
    %525 = vmatmul.mubr.bf16.gmra.mxu0 %v349
    %v526 = vpop.f32.mrf.mxu0
    %v527 = vadd.f32 %v209, %v526
    %v528 = vpop.f32.mrf.mxu0
    %v529 = vpop.f32.mrf.mxu0
    %v530 = vadd.f32 %v214, %v529
    %v531 = vpop.f32.mrf.mxu0
    %532 = vmatprep.mubr.bf16.mxu0 0
    %533 = vmatmul.mubr.bf16.gmra.mxu0 %v350
    %v534 = vpop.f32.mrf.mxu0
    %v535 = vadd.f32 %v219, %v534
    %v536 = vpop.f32.mrf.mxu0
    %v537 = vpop.f32.mrf.mxu0
    %v538 = vadd.f32 %v224, %v537
    %v539 = vpop.f32.mrf.mxu0
    %540 = vmatprep.mubr.bf16.mxu0 0
    %541 = vmatmul.mubr.bf16.gmra.mxu0 %v351
    %v542 = vpop.f32.mrf.mxu0
    %v543 = vadd.f32 %v229, %v542
    %v544 = vpop.f32.mrf.mxu0
    %v545 = vpop.f32.mrf.mxu0
    %v546 = vadd.f32 %v234, %v545
    %v547 = vpop.f32.mrf.mxu0
    %548 = vmatprep.mubr.bf16.mxu0 0
    %549 = vmatmul.mubr.bf16.gmra.mxu0 %v352
    %v550 = vpop.f32.mrf.mxu0
    %v551 = vadd.f32 %v239, %v550
    %v552 = vpop.f32.mrf.mxu0
    %v553 = vpop.f32.mrf.mxu0
    %v554 = vadd.f32 %v244, %v553
    %v555 = vpop.f32.mrf.mxu0
    %556 = vmatprep.mubr.bf16.mxu0 0
    %557 = vmatmul.mubr.bf16.gmra.mxu0 %v353
    %v558 = vpop.f32.mrf.mxu0
    %v559 = vadd.f32 %v249, %v558
    %v560 = vpop.f32.mrf.mxu0
    %v561 = vpop.f32.mrf.mxu0
    %v562 = vadd.f32 %v254, %v561
    %v563 = vpop.f32.mrf.mxu0
    %564 = vmatprep.mubr.bf16.mxu0 0
    %565 = vmatmul.mubr.bf16.gmra.mxu0 %v354
    %v566 = vpop.f32.mrf.mxu0
    %v567 = vadd.f32 %v259, %v566
    %v568 = vpop.f32.mrf.mxu0
    %v569 = vpop.f32.mrf.mxu0
    %v570 = vadd.f32 %v264, %v569
    %v571 = vpop.f32.mrf.mxu0
    %572 = vmatprep.mubr.bf16.mxu0 0
    %573 = vmatmul.mubr.bf16.gmra.mxu0 %v355
    %v574 = vpop.f32.mrf.mxu0
    %v575 = vadd.f32 %v269, %v574
    %v576 = vpop.f32.mrf.mxu0
    %v577 = vpop.f32.mrf.mxu0
    %v578 = vadd.f32 %v274, %v577
    %v579 = vpop.f32.mrf.mxu0
    %580 = vdwg.mxu0
    %vm581 = vcmp.gt.f32.partialorder %v455, 0.0
    %vm582 = vcmp.gt.f32.partialorder %v458, 0.0
    %vm583 = vcmp.gt.f32.partialorder %v463, 0.0
    %vm584 = vcmp.gt.f32.partialorder %v466, 0.0
    %vm585 = vcmp.gt.f32.partialorder %v471, 0.0
    %vm586 = vcmp.gt.f32.partialorder %v474, 0.0
    %vm587 = vcmp.gt.f32.partialorder %v479, 0.0
    %vm588 = vcmp.gt.f32.partialorder %v482, 0.0
    %vm589 = vcmp.gt.f32.partialorder %v487, 0.0
    %vm590 = vcmp.gt.f32.partialorder %v490, 0.0
    %vm591 = vcmp.gt.f32.partialorder %v495, 0.0
    %vm592 = vcmp.gt.f32.partialorder %v498, 0.0
    %vm593 = vcmp.gt.f32.partialorder %v503, 0.0
    %vm594 = vcmp.gt.f32.partialorder %v506, 0.0
    %vm595 = vcmp.gt.f32.partialorder %v511, 0.0
    %vm596 = vcmp.gt.f32.partialorder %v514, 0.0
    %vm597 = vcmp.gt.f32.partialorder %v519, 0.0
    %vm598 = vcmp.gt.f32.partialorder %v522, 0.0
    %vm599 = vcmp.gt.f32.partialorder %v527, 0.0
    %vm600 = vcmp.gt.f32.partialorder %v530, 0.0
    %vm601 = vcmp.gt.f32.partialorder %v535, 0.0
    %vm602 = vcmp.gt.f32.partialorder %v538, 0.0
    %vm603 = vcmp.gt.f32.partialorder %v543, 0.0
    %vm604 = vcmp.gt.f32.partialorder %v546, 0.0
    %vm605 = vcmp.gt.f32.partialorder %v551, 0.0
    %vm606 = vcmp.gt.f32.partialorder %v554, 0.0
    %vm607 = vcmp.gt.f32.partialorder %v559, 0.0
    %vm608 = vcmp.gt.f32.partialorder %v562, 0.0
    %vm609 = vcmp.gt.f32.partialorder %v567, 0.0
    %vm610 = vcmp.gt.f32.partialorder %v570, 0.0
    %vm611 = vcmp.gt.f32.partialorder %v575, 0.0
    %vm612 = vcmp.gt.f32.partialorder %v578, 0.0
    %v613 = vmul.f32 %v455, 0.2
    %v614 = vmul.f32 %v458, 0.2
    %v615 = vmul.f32 %v463, 0.2
    %v616 = vmul.f32 %v466, 0.2
    %v617 = vmul.f32 %v471, 0.2
    %v618 = vmul.f32 %v474, 0.2
    %v619 = vmul.f32 %v479, 0.2
    %v620 = vmul.f32 %v482, 0.2
    %v621 = vmul.f32 %v487, 0.2
    %v622 = vmul.f32 %v490, 0.2
    %v623 = vmul.f32 %v495, 0.2
    %v624 = vmul.f32 %v498, 0.2
    %v625 = vmul.f32 %v503, 0.2
    %v626 = vmul.f32 %v506, 0.2
    %v627 = vmul.f32 %v511, 0.2
    %v628 = vmul.f32 %v514, 0.2
    %v629 = vmul.f32 %v519, 0.2
    %v630 = vmul.f32 %v522, 0.2
    %v631 = vmul.f32 %v527, 0.2
    %v632 = vmul.f32 %v530, 0.2
    %v633 = vmul.f32 %v535, 0.2
    %v634 = vmul.f32 %v538, 0.2
    %v635 = vmul.f32 %v543, 0.2
    %v636 = vmul.f32 %v546, 0.2
    %v637 = vmul.f32 %v551, 0.2
    %v638 = vmul.f32 %v554, 0.2
    %v639 = vmul.f32 %v559, 0.2
    %v640 = vmul.f32 %v562, 0.2
    %v641 = vmul.f32 %v567, 0.2
    %v642 = vmul.f32 %v570, 0.2
    %v643 = vmul.f32 %v575, 0.2
    %v644 = vmul.f32 %v578, 0.2
    %v645 = vsel %vm581, %v455, %v613
    %v646 = vsel %vm582, %v458, %v614
    %v647 = vsel %vm583, %v463, %v615
    %v648 = vsel %vm584, %v466, %v616
    %v649 = vsel %vm585, %v471, %v617
    %v650 = vsel %vm586, %v474, %v618
    %v651 = vsel %vm587, %v479, %v619
    %v652 = vsel %vm588, %v482, %v620
    %v653 = vsel %vm589, %v487, %v621
    %v654 = vsel %vm590, %v490, %v622
    %v655 = vsel %vm591, %v495, %v623
    %v656 = vsel %vm592, %v498, %v624
    %v657 = vsel %vm593, %v503, %v625
    %v658 = vsel %vm594, %v506, %v626
    %v659 = vsel %vm595, %v511, %v627
    %v660 = vsel %vm596, %v514, %v628
    %v661 = vsel %vm597, %v519, %v629
    %v662 = vsel %vm598, %v522, %v630
    %v663 = vsel %vm599, %v527, %v631
    %v664 = vsel %vm600, %v530, %v632
    %v665 = vsel %vm601, %v535, %v633
    %v666 = vsel %vm602, %v538, %v634
    %v667 = vsel %vm603, %v543, %v635
    %v668 = vsel %vm604, %v546, %v636
    %v669 = vsel %vm605, %v551, %v637
    %v670 = vsel %vm606, %v554, %v638
    %v671 = vsel %vm607, %v559, %v639
    %v672 = vsel %vm608, %v562, %v640
    %v673 = vsel %vm609, %v567, %v641
    %v674 = vsel %vm610, %v570, %v642
    %v675 = vsel %vm611, %v575, %v643
    %v676 = vsel %vm612, %v578, %v644
    %v677 = vld [vmem:[%s3] sm:$0xff]
    %v678 = vld [vmem:[%s3 + $0x8] sm:$0xff]
    %v679 = vld [vmem:[%s3 + $0x10] sm:$0xff]
    %v680 = vld [vmem:[%s3 + $0x18] sm:$0xff]
    %v681 = vld [vmem:[%s3 + $0x20] sm:$0xff]
    %v682 = vld [vmem:[%s3 + $0x28] sm:$0xff]
    %v683 = vld [vmem:[%s3 + $0x30] sm:$0xff]
    %v684 = vld [vmem:[%s3 + $0x38] sm:$0xff]
    %v685 = vld [vmem:[%s3 + $0x40] sm:$0xff]
    %v686 = vld [vmem:[%s3 + $0x48] sm:$0xff]
    %v687 = vld [vmem:[%s3 + $0x50] sm:$0xff]
    %v688 = vld [vmem:[%s3 + $0x58] sm:$0xff]
    %v689 = vld [vmem:[%s3 + $0x60] sm:$0xff]
    %v690 = vld [vmem:[%s3 + $0x68] sm:$0xff]
    %v691 = vld [vmem:[%s3 + $0x70] sm:$0xff]
    %v692 = vld [vmem:[%s3 + $0x78] sm:$0xff]
    %v693 = vpack.c.bf16 %v646, %v645
    %v694 = vpack.c.bf16 %v648, %v647
    %v695 = vpack.c.bf16 %v650, %v649
    %v696 = vpack.c.bf16 %v652, %v651
    %v697 = vpack.c.bf16 %v654, %v653
    %v698 = vpack.c.bf16 %v656, %v655
    %v699 = vpack.c.bf16 %v658, %v657
    %v700 = vpack.c.bf16 %v660, %v659
    %v701 = vpack.c.bf16 %v662, %v661
    %v702 = vpack.c.bf16 %v664, %v663
    %v703 = vpack.c.bf16 %v666, %v665
    %v704 = vpack.c.bf16 %v668, %v667
    %v705 = vpack.c.bf16 %v670, %v669
    %v706 = vpack.c.bf16 %v672, %v671
    %v707 = vpack.c.bf16 %v674, %v673
    %v708 = vpack.c.bf16 %v676, %v675
    %v709 = vld [vmem:[%s4] sm:$0xff]
    %v710 = vld [vmem:[%s4 + $0x8] sm:$0xff]
    %v711 = vld [vmem:[%s4 + $0x10] sm:$0xff]
    %v712 = vld [vmem:[%s4 + $0x18] sm:$0xff]
    %v713 = vld [vmem:[%s4 + $0x20] sm:$0xff]
    %v714 = vld [vmem:[%s4 + $0x28] sm:$0xff]
    %v715 = vld [vmem:[%s4 + $0x30] sm:$0xff]
    %v716 = vld [vmem:[%s4 + $0x38] sm:$0xff]
    %v717 = vld [vmem:[%s4 + $0x40] sm:$0xff]
    %v718 = vld [vmem:[%s4 + $0x48] sm:$0xff]
    %v719 = vld [vmem:[%s4 + $0x50] sm:$0xff]
    %v720 = vld [vmem:[%s4 + $0x58] sm:$0xff]
    %v721 = vld [vmem:[%s4 + $0x60] sm:$0xff]
    %v722 = vld [vmem:[%s4 + $0x68] sm:$0xff]
    %v723 = vld [vmem:[%s4 + $0x70] sm:$0xff]
    %v724 = vld [vmem:[%s4 + $0x78] sm:$0xff]
    %726 = vset.pattern.permute.xlu0 0
    %727 = vperm.xlu0 %726, %v709
    %v728 = vpop.permute.xlu0 %727
    %731 = vset.pattern.permute.xlu0 0
    %732 = vperm.xlu0 %731, %v710
    %v733 = vpop.permute.xlu0 %732
    %736 = vset.pattern.permute.xlu0 0
    %737 = vperm.xlu0 %736, %v711
    %v738 = vpop.permute.xlu0 %737
    %741 = vset.pattern.permute.xlu0 0
    %742 = vperm.xlu0 %741, %v712
    %v743 = vpop.permute.xlu0 %742
    %746 = vset.pattern.permute.xlu0 0
    %747 = vperm.xlu0 %746, %v713
    %v748 = vpop.permute.xlu0 %747
    %751 = vset.pattern.permute.xlu0 0
    %752 = vperm.xlu0 %751, %v714
    %v753 = vpop.permute.xlu0 %752
    %756 = vset.pattern.permute.xlu0 0
    %757 = vperm.xlu0 %756, %v715
    %v758 = vpop.permute.xlu0 %757
    %761 = vset.pattern.permute.xlu0 0
    %762 = vperm.xlu0 %761, %v716
    %v763 = vpop.permute.xlu0 %762
    %766 = vset.pattern.permute.xlu0 0
    %767 = vperm.xlu0 %766, %v717
    %v768 = vpop.permute.xlu0 %767
    %771 = vset.pattern.permute.xlu0 0
    %772 = vperm.xlu0 %771, %v718
    %v773 = vpop.permute.xlu0 %772
    %776 = vset.pattern.permute.xlu0 0
    %777 = vperm.xlu0 %776, %v719
    %v778 = vpop.permute.xlu0 %777
    %781 = vset.pattern.permute.xlu0 0
    %782 = vperm.xlu0 %781, %v720
    %v783 = vpop.permute.xlu0 %782
    %786 = vset.pattern.permute.xlu0 0
    %787 = vperm.xlu0 %786, %v721
    %v788 = vpop.permute.xlu0 %787
    %791 = vset.pattern.permute.xlu0 0
    %792 = vperm.xlu0 %791, %v722
    %v793 = vpop.permute.xlu0 %792
    %796 = vset.pattern.permute.xlu0 0
    %797 = vperm.xlu0 %796, %v723
    %v798 = vpop.permute.xlu0 %797
    %801 = vset.pattern.permute.xlu0 0
    %802 = vperm.xlu0 %801, %v724
    %v803 = vpop.permute.xlu0 %802
    %v821 = vunpack.c.l.b16 %v677
    %v822 = vunpack.c.h.b16 %v677
    %v823 = vunpack.c.l.b16 %v678
    %v824 = vunpack.c.h.b16 %v678
    %v825 = vunpack.c.l.b16 %v679
    %v826 = vunpack.c.h.b16 %v679
    %v827 = vunpack.c.l.b16 %v680
    %v828 = vunpack.c.h.b16 %v680
    %v829 = vunpack.c.l.b16 %v681
    %v830 = vunpack.c.h.b16 %v681
    %v831 = vunpack.c.l.b16 %v682
    %v832 = vunpack.c.h.b16 %v682
    %v833 = vunpack.c.l.b16 %v683
    %v834 = vunpack.c.h.b16 %v683
    %v835 = vunpack.c.l.b16 %v684
    %v836 = vunpack.c.h.b16 %v684
    %v837 = vunpack.c.l.b16 %v685
    %v838 = vunpack.c.h.b16 %v685
    %v839 = vunpack.c.l.b16 %v686
    %v840 = vunpack.c.h.b16 %v686
    %v841 = vunpack.c.l.b16 %v687
    %v842 = vunpack.c.h.b16 %v687
    %v843 = vunpack.c.l.b16 %v688
    %v844 = vunpack.c.h.b16 %v688
    %v845 = vunpack.c.l.b16 %v689
    %v846 = vunpack.c.h.b16 %v689
    %v847 = vunpack.c.l.b16 %v690
    %v848 = vunpack.c.h.b16 %v690
    %v849 = vunpack.c.l.b16 %v691
    %v850 = vunpack.c.h.b16 %v691
    %v851 = vunpack.c.l.b16 %v692
    %v852 = vunpack.c.h.b16 %v692
    %v853 = vpack.c.b16 %v823, %v821
    %v854 = vpack.c.b16 %v824, %v822
    %v855 = vpack.c.b16 %v827, %v825
    %v856 = vpack.c.b16 %v828, %v826
    %v857 = vpack.c.b16 %v831, %v829
    %v858 = vpack.c.b16 %v832, %v830
    %v859 = vpack.c.b16 %v835, %v833
    %v860 = vpack.c.b16 %v836, %v834
    %v861 = vpack.c.b16 %v839, %v837
    %v862 = vpack.c.b16 %v840, %v838
    %v863 = vpack.c.b16 %v843, %v841
    %v864 = vpack.c.b16 %v844, %v842
    %v865 = vpack.c.b16 %v847, %v845
    %v866 = vpack.c.b16 %v848, %v846
    %v867 = vpack.c.b16 %v851, %v849
    %v868 = vpack.c.b16 %v852, %v850
    %885 = vmatprep.subr.bf16.mxu0 0
    %886 = vmatpush1.bf16.msra.mxu0 %v700
    %887 = vmatprep.subr.bf16.mxu0 0
    %888 = vmatpush1.bf16.msra.mxu0 %v699
    %889 = vmatprep.subr.bf16.mxu0 0
    %890 = vmatpush1.bf16.msra.mxu0 %v698
    %891 = vmatprep.subr.bf16.mxu0 0
    %892 = vmatpush1.bf16.msra.mxu0 %v697
    %893 = vmatprep.subr.bf16.mxu0 0
    %894 = vmatpush1.bf16.msra.mxu0 %v696
    %895 = vmatprep.subr.bf16.mxu0 0
    %896 = vmatpush1.bf16.msra.mxu0 %v695
    %897 = vmatprep.subr.bf16.mxu0 0
    %898 = vmatpush1.bf16.msra.mxu0 %v694
    %899 = vmatprep.subr.bf16.mxu0 0
    %900 = vmatpush1.bf16.msra.mxu0 %v693
    %901 = vmatprep.subr.bf16.mxu0 0
    %902 = vmatpush2.bf16.msra.mxu0 %v708
    %903 = vmatprep.subr.bf16.mxu0 0
    %904 = vmatpush2.bf16.msra.mxu0 %v707
    %905 = vmatprep.subr.bf16.mxu0 0
    %906 = vmatpush2.bf16.msra.mxu0 %v706
    %907 = vmatprep.subr.bf16.mxu0 0
    %908 = vmatpush2.bf16.msra.mxu0 %v705
    %909 = vmatprep.subr.bf16.mxu0 0
    %910 = vmatpush2.bf16.msra.mxu0 %v704
    %911 = vmatprep.subr.bf16.mxu0 0
    %912 = vmatpush2.bf16.msra.mxu0 %v703
    %913 = vmatprep.subr.bf16.mxu0 0
    %914 = vmatpush2.bf16.msra.mxu0 %v702
    %915 = vmatprep.subr.bf16.mxu0 0
    %916 = vmatpush2.bf16.msra.mxu0 %v701
    %917 = vmatprep.mubr.bf16.mxu0 %v854
    %918 = vmatmul.mubr.bf16.gmra.mxu0 %v853
    %v919 = vpop.f32.mrf.mxu0
    %v920 = vadd.f32 %v728, %v919
    %v921 = vpop.f32.mrf.mxu0
    %v922 = vpop.f32.mrf.mxu0
    %v923 = vadd.f32 %v733, %v922
    %v924 = vpop.f32.mrf.mxu0
    %925 = vmatprep.mubr.bf16.mxu0 %v856
    %926 = vmatmul.mubr.bf16.gmra.mxu0 %v855
    %v927 = vpop.f32.mrf.mxu0
    %v928 = vadd.f32 %v738, %v927
    %v929 = vpop.f32.mrf.mxu0
    %v930 = vpop.f32.mrf.mxu0
    %v931 = vadd.f32 %v743, %v930
    %v932 = vpop.f32.mrf.mxu0
    %933 = vmatprep.mubr.bf16.mxu0 %v858
    %934 = vmatmul.mubr.bf16.gmra.mxu0 %v857
    %v935 = vpop.f32.mrf.mxu0
    %v936 = vadd.f32 %v748, %v935
    %v937 = vpop.f32.mrf.mxu0
    %v938 = vpop.f32.mrf.mxu0
    %v939 = vadd.f32 %v753, %v938
    %v940 = vpop.f32.mrf.mxu0
    %941 = vmatprep.mubr.bf16.mxu0 %v860
    %942 = vmatmul.mubr.bf16.gmra.mxu0 %v859
    %v943 = vpop.f32.mrf.mxu0
    %v944 = vadd.f32 %v758, %v943
    %v945 = vpop.f32.mrf.mxu0
    %v946 = vpop.f32.mrf.mxu0
    %v947 = vadd.f32 %v763, %v946
    %v948 = vpop.f32.mrf.mxu0
    %949 = vmatprep.mubr.bf16.mxu0 %v862
    %950 = vmatmul.mubr.bf16.gmra.mxu0 %v861
    %v951 = vpop.f32.mrf.mxu0
    %v952 = vadd.f32 %v768, %v951
    %v953 = vpop.f32.mrf.mxu0
    %v954 = vpop.f32.mrf.mxu0
    %v955 = vadd.f32 %v773, %v954
    %v956 = vpop.f32.mrf.mxu0
    %957 = vmatprep.mubr.bf16.mxu0 %v864
    %958 = vmatmul.mubr.bf16.gmra.mxu0 %v863
    %v959 = vpop.f32.mrf.mxu0
    %v960 = vadd.f32 %v778, %v959
    %v961 = vpop.f32.mrf.mxu0
    %v962 = vpop.f32.mrf.mxu0
    %v963 = vadd.f32 %v783, %v962
    %v964 = vpop.f32.mrf.mxu0
    %965 = vmatprep.mubr.bf16.mxu0 %v866
    %966 = vmatmul.mubr.bf16.gmra.mxu0 %v865
    %v967 = vpop.f32.mrf.mxu0
    %v968 = vadd.f32 %v788, %v967
    %v969 = vpop.f32.mrf.mxu0
    %v970 = vpop.f32.mrf.mxu0
    %v971 = vadd.f32 %v793, %v970
    %v972 = vpop.f32.mrf.mxu0
    %973 = vmatprep.mubr.bf16.mxu0 %v868
    %974 = vmatmul.mubr.bf16.gmra.mxu0 %v867
    %v975 = vpop.f32.mrf.mxu0
    %v976 = vadd.f32 %v798, %v975
    %v977 = vpop.f32.mrf.mxu0
    %v978 = vpop.f32.mrf.mxu0
    %v979 = vadd.f32 %v803, %v978
    %v980 = vpop.f32.mrf.mxu0
    %981 = vdwg.mxu0
    %vm982 = vcmp.gt.f32.partialorder %v920, 0.0
    %vm983 = vcmp.gt.f32.partialorder %v923, 0.0
    %vm984 = vcmp.gt.f32.partialorder %v928, 0.0
    %vm985 = vcmp.gt.f32.partialorder %v931, 0.0
    %vm986 = vcmp.gt.f32.partialorder %v936, 0.0
    %vm987 = vcmp.gt.f32.partialorder %v939, 0.0
    %vm988 = vcmp.gt.f32.partialorder %v944, 0.0
    %vm989 = vcmp.gt.f32.partialorder %v947, 0.0
    %vm990 = vcmp.gt.f32.partialorder %v952, 0.0
    %vm991 = vcmp.gt.f32.partialorder %v955, 0.0
    %vm992 = vcmp.gt.f32.partialorder %v960, 0.0
    %vm993 = vcmp.gt.f32.partialorder %v963, 0.0
    %vm994 = vcmp.gt.f32.partialorder %v968, 0.0
    %vm995 = vcmp.gt.f32.partialorder %v971, 0.0
    %vm996 = vcmp.gt.f32.partialorder %v976, 0.0
    %vm997 = vcmp.gt.f32.partialorder %v979, 0.0
    %v998 = vmul.f32 %v920, 0.2
    %v999 = vmul.f32 %v923, 0.2
    %v1000 = vmul.f32 %v928, 0.2
    %v1001 = vmul.f32 %v931, 0.2
    %v1002 = vmul.f32 %v936, 0.2
    %v1003 = vmul.f32 %v939, 0.2
    %v1004 = vmul.f32 %v944, 0.2
    %v1005 = vmul.f32 %v947, 0.2
    %v1006 = vmul.f32 %v952, 0.2
    %v1007 = vmul.f32 %v955, 0.2
    %v1008 = vmul.f32 %v960, 0.2
    %v1009 = vmul.f32 %v963, 0.2
    %v1010 = vmul.f32 %v968, 0.2
    %v1011 = vmul.f32 %v971, 0.2
    %v1012 = vmul.f32 %v976, 0.2
    %v1013 = vmul.f32 %v979, 0.2
    %v1014 = vsel %vm982, %v920, %v998
    %v1015 = vsel %vm983, %v923, %v999
    %v1016 = vsel %vm984, %v928, %v1000
    %v1017 = vsel %vm985, %v931, %v1001
    %v1018 = vsel %vm986, %v936, %v1002
    %v1019 = vsel %vm987, %v939, %v1003
    %v1020 = vsel %vm988, %v944, %v1004
    %v1021 = vsel %vm989, %v947, %v1005
    %v1022 = vsel %vm990, %v952, %v1006
    %v1023 = vsel %vm991, %v955, %v1007
    %v1024 = vsel %vm992, %v960, %v1008
    %v1025 = vsel %vm993, %v963, %v1009
    %v1026 = vsel %vm994, %v968, %v1010
    %v1027 = vsel %vm995, %v971, %v1011
    %v1028 = vsel %vm996, %v976, %v1012
    %v1029 = vsel %vm997, %v979, %v1013
    %v1030 = vld [vmem:[%s5] sm:$0xf]
    %v1031 = vld [vmem:[%s5 + $0x4] sm:$0xf]
    %v1032 = vld [vmem:[%s5 + $0x8] sm:$0xf]
    %v1033 = vld [vmem:[%s5 + $0xc] sm:$0xf]
    %v1034 = vld [vmem:[%s5 + $0x10] sm:$0xf]
    %v1035 = vld [vmem:[%s5 + $0x14] sm:$0xf]
    %v1036 = vld [vmem:[%s5 + $0x18] sm:$0xf]
    %v1037 = vld [vmem:[%s5 + $0x1c] sm:$0xf]
    %v1038 = vpack.c.bf16 %v1015, %v1014
    %v1039 = vpack.c.bf16 %v1017, %v1016
    %v1040 = vpack.c.bf16 %v1019, %v1018
    %v1041 = vpack.c.bf16 %v1021, %v1020
    %v1042 = vpack.c.bf16 %v1023, %v1022
    %v1043 = vpack.c.bf16 %v1025, %v1024
    %v1044 = vpack.c.bf16 %v1027, %v1026
    %v1045 = vpack.c.bf16 %v1029, %v1028
    %v1046 = vld [vmem:[%s6] sm:$0xff]
    %v1047 = vld [vmem:[%s6 + $0x8] sm:$0xff]
    %v1048 = vld [vmem:[%s6 + $0x10] sm:$0xff]
    %v1049 = vld [vmem:[%s6 + $0x18] sm:$0xff]
    %v1050 = vld [vmem:[%s6 + $0x20] sm:$0xff]
    %v1051 = vld [vmem:[%s6 + $0x28] sm:$0xff]
    %v1052 = vld [vmem:[%s6 + $0x30] sm:$0xff]
    %v1053 = vld [vmem:[%s6 + $0x38] sm:$0xff]
    %1055 = vset.pattern.permute.xlu0 0
    %1056 = vperm.xlu0 %1055, %v1046
    %v1057 = vpop.permute.xlu0 %1056
    %1060 = vset.pattern.permute.xlu0 0
    %1061 = vperm.xlu0 %1060, %v1047
    %v1062 = vpop.permute.xlu0 %1061
    %1065 = vset.pattern.permute.xlu0 0
    %1066 = vperm.xlu0 %1065, %v1048
    %v1067 = vpop.permute.xlu0 %1066
    %1070 = vset.pattern.permute.xlu0 0
    %1071 = vperm.xlu0 %1070, %v1049
    %v1072 = vpop.permute.xlu0 %1071
    %1075 = vset.pattern.permute.xlu0 0
    %1076 = vperm.xlu0 %1075, %v1050
    %v1077 = vpop.permute.xlu0 %1076
    %1080 = vset.pattern.permute.xlu0 0
    %1081 = vperm.xlu0 %1080, %v1051
    %v1082 = vpop.permute.xlu0 %1081
    %1085 = vset.pattern.permute.xlu0 0
    %1086 = vperm.xlu0 %1085, %v1052
    %v1087 = vpop.permute.xlu0 %1086
    %1090 = vset.pattern.permute.xlu0 0
    %1091 = vperm.xlu0 %1090, %v1053
    %v1092 = vpop.permute.xlu0 %1091
    %v1102 = vunpack.c.l.b16 %v1030
    %v1103 = vunpack.c.l.b16 %v1031
    %v1104 = vunpack.c.l.b16 %v1032
    %v1105 = vunpack.c.l.b16 %v1033
    %v1106 = vunpack.c.l.b16 %v1034
    %v1107 = vunpack.c.l.b16 %v1035
    %v1108 = vunpack.c.l.b16 %v1036
    %v1109 = vunpack.c.l.b16 %v1037
    %v1110 = vpack.c.b16 %v1103, %v1102
    %v1111 = vpack.c.b16 %v1105, %v1104
    %v1112 = vpack.c.b16 %v1107, %v1106
    %v1113 = vpack.c.b16 %v1109, %v1108
    %1118 = vmatprep.subr.bf16.mxu0 0
    %1119 = vmatpush1.bf16.msra.mxu0 %v1045
    %1120 = vmatprep.subr.bf16.mxu0 0
    %1121 = vmatpush1.bf16.msra.mxu0 %v1044
    %1122 = vmatprep.subr.bf16.mxu0 0
    %1123 = vmatpush1.bf16.msra.mxu0 %v1043
    %1124 = vmatprep.subr.bf16.mxu0 0
    %1125 = vmatpush1.bf16.msra.mxu0 %v1042
    %1126 = vmatprep.subr.bf16.mxu0 0
    %1127 = vmatpush1.bf16.msra.mxu0 %v1041
    %1128 = vmatprep.subr.bf16.mxu0 0
    %1129 = vmatpush1.bf16.msra.mxu0 %v1040
    %1130 = vmatprep.subr.bf16.mxu0 0
    %1131 = vmatpush1.bf16.msra.mxu0 %v1039
    %1132 = vmatprep.subr.bf16.mxu0 0
    %1133 = vmatpush1.bf16.msra.mxu0 %v1038
    %1134 = vmatprep.subr.bf16.mxu0 0
    %1135 = vmatpush2.bf16.msra.mxu0 0
    %1136 = vmatprep.subr.bf16.mxu0 0
    %1137 = vmatpush2.bf16.msra.mxu0 0
    %1138 = vmatprep.subr.bf16.mxu0 0
    %1139 = vmatpush2.bf16.msra.mxu0 0
    %1140 = vmatprep.subr.bf16.mxu0 0
    %1141 = vmatpush2.bf16.msra.mxu0 0
    %1142 = vmatprep.subr.bf16.mxu0 0
    %1143 = vmatpush2.bf16.msra.mxu0 0
    %1144 = vmatprep.subr.bf16.mxu0 0
    %1145 = vmatpush2.bf16.msra.mxu0 0
    %1146 = vmatprep.subr.bf16.mxu0 0
    %1147 = vmatpush2.bf16.msra.mxu0 0
    %1148 = vmatprep.subr.bf16.mxu0 0
    %1149 = vmatpush2.bf16.msra.mxu0 0
    %1150 = vmatprep.mubr.bf16.mxu0 0
    %1151 = vmatmul.mubr.bf16.gmra.mxu0 %v1110
    %v1152 = vpop.f32.mrf.mxu0
    %v1153 = vadd.f32 %v1057, %v1152
    %v1154 = vpop.f32.mrf.mxu0
    %v1155 = vpop.f32.mrf.mxu0
    %v1156 = vadd.f32 %v1062, %v1155
    %v1157 = vpop.f32.mrf.mxu0
    %1158 = vmatprep.mubr.bf16.mxu0 0
    %1159 = vmatmul.mubr.bf16.gmra.mxu0 %v1111
    %v1160 = vpop.f32.mrf.mxu0
    %v1161 = vadd.f32 %v1067, %v1160
    %v1162 = vpop.f32.mrf.mxu0
    %v1163 = vpop.f32.mrf.mxu0
    %v1164 = vadd.f32 %v1072, %v1163
    %v1165 = vpop.f32.mrf.mxu0
    %1166 = vmatprep.mubr.bf16.mxu0 0
    %1167 = vmatmul.mubr.bf16.gmra.mxu0 %v1112
    %v1168 = vpop.f32.mrf.mxu0
    %v1169 = vadd.f32 %v1077, %v1168
    %v1170 = vpop.f32.mrf.mxu0
    %v1171 = vpop.f32.mrf.mxu0
    %v1172 = vadd.f32 %v1082, %v1171
    %v1173 = vpop.f32.mrf.mxu0
    %1174 = vmatprep.mubr.bf16.mxu0 0
    %1175 = vmatmul.mubr.bf16.gmra.mxu0 %v1113
    %v1176 = vpop.f32.mrf.mxu0
    %v1177 = vadd.f32 %v1087, %v1176
    %v1178 = vpop.f32.mrf.mxu0
    %v1179 = vpop.f32.mrf.mxu0
    %v1180 = vadd.f32 %v1092, %v1179
    %v1181 = vpop.f32.mrf.mxu0
    %1182 = vdwg.mxu0
    %vm1183 = vcmp.gt.f32.partialorder %v1153, 0.0
    %vm1184 = vcmp.gt.f32.partialorder %v1156, 0.0
    %vm1185 = vcmp.gt.f32.partialorder %v1161, 0.0
    %vm1186 = vcmp.gt.f32.partialorder %v1164, 0.0
    %vm1187 = vcmp.gt.f32.partialorder %v1169, 0.0
    %vm1188 = vcmp.gt.f32.partialorder %v1172, 0.0
    %vm1189 = vcmp.gt.f32.partialorder %v1177, 0.0
    %vm1190 = vcmp.gt.f32.partialorder %v1180, 0.0
    %v1191 = vmul.f32 %v1153, 0.2
    %v1192 = vmul.f32 %v1156, 0.2
    %v1193 = vmul.f32 %v1161, 0.2
    %v1194 = vmul.f32 %v1164, 0.2
    %v1195 = vmul.f32 %v1169, 0.2
    %v1196 = vmul.f32 %v1172, 0.2
    %v1197 = vmul.f32 %v1177, 0.2
    %v1198 = vmul.f32 %v1180, 0.2
    %v1199 = vsel %vm1183, %v1153, %v1191
    %v1200 = vsel %vm1184, %v1156, %v1192
    %v1201 = vsel %vm1185, %v1161, %v1193
    %v1202 = vsel %vm1186, %v1164, %v1194
    %v1203 = vsel %vm1187, %v1169, %v1195
    %v1204 = vsel %vm1188, %v1172, %v1196
    %v1205 = vsel %vm1189, %v1177, %v1197
    %v1206 = vsel %vm1190, %v1180, %v1198
    %v1207 = vld [vmem:[%s7] sm:$0xff]
    %v1208 = vld [vmem:[%s7 + $0x8] sm:$0xff]
    %v1209 = vld [vmem:[%s7 + $0x10] sm:$0xff]
    %v1210 = vld [vmem:[%s7 + $0x18] sm:$0xff]
    %v1211 = vld [vmem:[%s7 + $0x20] sm:$0xff]
    %v1212 = vld [vmem:[%s7 + $0x28] sm:$0xff]
    %v1213 = vld [vmem:[%s7 + $0x30] sm:$0xff]
    %v1214 = vld [vmem:[%s7 + $0x38] sm:$0xff]
    %1216 = vset.pattern.permute.xlu0 0
    %1217 = vperm.xlu0 %1216, %v1207
    %v1218 = vpop.permute.xlu0 %1217
    %1221 = vset.pattern.permute.xlu0 0
    %1222 = vperm.xlu0 %1221, %v1208
    %v1223 = vpop.permute.xlu0 %1222
    %1226 = vset.pattern.permute.xlu0 0
    %1227 = vperm.xlu0 %1226, %v1209
    %v1228 = vpop.permute.xlu0 %1227
    %1231 = vset.pattern.permute.xlu0 0
    %1232 = vperm.xlu0 %1231, %v1210
    %v1233 = vpop.permute.xlu0 %1232
    %1236 = vset.pattern.permute.xlu0 0
    %1237 = vperm.xlu0 %1236, %v1211
    %v1238 = vpop.permute.xlu0 %1237
    %1241 = vset.pattern.permute.xlu0 0
    %1242 = vperm.xlu0 %1241, %v1212
    %v1243 = vpop.permute.xlu0 %1242
    %1246 = vset.pattern.permute.xlu0 0
    %1247 = vperm.xlu0 %1246, %v1213
    %v1248 = vpop.permute.xlu0 %1247
    %1251 = vset.pattern.permute.xlu0 0
    %1252 = vperm.xlu0 %1251, %v1214
    %v1253 = vpop.permute.xlu0 %1252
    %v1255 = vmul.f32 %v1199, %v1218
    %v1256 = vmul.f32 %v1200, %v1223
    %v1257 = vmul.f32 %v1201, %v1228
    %v1258 = vmul.f32 %v1202, %v1233
    %v1259 = vmul.f32 %v1203, %v1238
    %v1260 = vmul.f32 %v1204, %v1243
    %v1261 = vmul.f32 %v1205, %v1248
    %v1262 = vmul.f32 %v1206, %v1253
    %v1263 = vadd.f32 %v1255, %v1256
    %v1264 = vadd.f32 %v1263, %v1257
    %v1265 = vadd.f32 %v1264, %v1258
    %v1266 = vadd.f32 %v1265, %v1259
    %v1267 = vadd.f32 %v1266, %v1260
    %v1268 = vadd.f32 %v1267, %v1261
    %v1269 = vadd.f32 %v1268, %v1262
    %v1270 = vrot.slane %v1269, 4
    %v1271 = vadd.f32 %v1269, %v1270
    %v1272 = vrot.slane %v1271, 2
    %v1273 = vadd.f32 %v1271, %v1272
    %v1274 = vrot.slane %v1273, 1
    %v1275 = vadd.f32 %v1273, %v1274
    %v1276 = vld [vmem:[#allocation2] sm:$0x1]
    %1278 = vset.pattern.permute.xlu0 0
    %1279 = vperm.xlu0 %1278, %v1276
    %v1280 = vpop.permute.xlu0 %1279
    %v1282 = vlaneseq
    %v1283 = vshrl.u32 %v1282, 7
    %v1284 = vsub.s32 0, %v1283
    %v1285 = vrot.slane %v1280, %v1284
    %v1286 = vadd.f32 %v1275, %v1285
    %v1287 = vsub.f32 0.0, %v1286
    %v1288 = vmul.f32 %v1287, 1.442695
    %v1289 = vpow.pop %v1288
    %v1290 = vadd.f32 %v1289, 1.0
    %v1291 = vrcp.pop %v1290
    %1292 = vst [vmem:[#allocation3] sm:$0x1] %v1291
    // Predicated region
    $region38: #{tpu_custom_call.1} parent=1 // pred_check
      _
    $region39: #{tpu_custom_call.1} parent=1 // pred_check_branch
      %1294 = sbr.rel (0) target = $region41
    $region40: #{tpu_custom_call.1} parent=1 // pred_region
      %s1296 = ssub.s32 16, 16
      %1297 = vsyncadd [#allocation4], %s1296
      %s1299 = sshll.u32 [#allocation3], 4
      %s1300 = int_to_ptr.vmem [resolvable:$true] %s1299
      %1302 = dma.vmem_to_hbm [thread:$0]  %s1300, 16, %s9, [#allocation4]
    $region41: #{tpu_custom_call.1} parent=1 // pred_fallthru
      _
    // Predicated region
    $region42: #{tpu_custom_call.1} parent=1 // pred_check
      _
    $region43: #{tpu_custom_call.1} parent=1 // pred_check_branch
      %1304 = sbr.rel (0) target = $region45
    $region44: #{tpu_custom_call.1} parent=1 // pred_region
      %1305 = dma.done [#allocation4], 16
    $region45: #{tpu_custom_call.1} parent=1 // pred_fallthru
      _
    %1306 = vsyncpa [#allocation4], 1

</llo_original>
